<compile_context>
chip_gen: v6e
topology: v6e:2x2x1
jax: 0.10.0
libtpu: 0.0.40
codegen_flags: <defaults>
</compile_context>

<pallas_src>
import functools

import jax
import jax.numpy as jnp
from jax.experimental import pallas as pl
from jax.experimental.pallas import tpu as pltpu


def _round_up(a, b):
    return (a + b - 1) // b * b


# ---------------------------------------------------------------------------
# Pallas kernel: tiled matmul with fused BN-shift + ReLU epilogue
# ---------------------------------------------------------------------------

def _matmul_bn_relu_kernel(p_ref, w_ref, shift_ref, o_ref, acc_ref):
    # p_ref:     (tm, tk)  bf16 im2col patches tile
    # w_ref:     (tk, tn)  bf16 weight tile (BN scale already folded in)
    # shift_ref: (1,  tn)  f32  BN shift (beta - mean*scale)
    # o_ref:     (tm, tn)  f32  output tile
    # acc_ref:   (tm, tn)  f32  VMEM accumulator scratch
    @pl.when(pl.program_id(2) == 0)
    def _init():
        acc_ref[...] = jnp.zeros_like(acc_ref)

    acc_ref[...] += jnp.dot(p_ref[...], w_ref[...],
                            preferred_element_type=jnp.float32)

    @pl.when(pl.program_id(2) == pl.num_programs(2) - 1)
    def _finalize():
        o_ref[...] = jnp.maximum(acc_ref[...] + shift_ref[...], 0.0
                                 ).astype(o_ref.dtype)


# ---------------------------------------------------------------------------
# Wrapper: im2col (bf16) + tiled pallas_call, NCHW in / NCHW out
# ---------------------------------------------------------------------------

def basic_conv2d_forward(params, x_nchw, *, ksize, stride, padding,
                         tm=256, tn=256, tk=256):
    """Fused conv(bias=False) + BatchNorm(eval, eps=1e-3) + ReLU."""
    (KH, KW), (sh, sw), (ph, pw) = ksize, stride, padding
    x = jnp.transpose(x_nchw, (0, 2, 3, 1)).astype(jnp.float32)   # NHWC
    N, H, W, Cin = x.shape
    Ho = (H + 2 * ph - KH) // sh + 1
    Wo = (W + 2 * pw - KW) // sw + 1

    xp = jnp.pad(x, ((0, 0), (ph, ph), (pw, pw), (0, 0)))
    taps = []
    for kh in range(KH):
        for kw in range(KW):
            taps.append(xp[:, kh:kh + (Ho - 1) * sh + 1:sh,
                            kw:kw + (Wo - 1) * sw + 1:sw, :])
    patches = jnp.concatenate(taps, axis=-1)
    patches = patches.reshape(N * Ho * Wo, KH * KW * Cin).astype(jnp.bfloat16)

    w = params['w_mat']                       # (K, Cout) bf16, BN scale folded
    shift = params['shift']                   # (1, Cout) f32
    M, K = patches.shape
    Cout = w.shape[1]

    # Tile sizes: lane dims multiples of 128, sublane dims multiples of 16
    # (bf16 packing), clamped to the padded problem size.
    tm_ = min(tm, _round_up(M, 16))
    tk_ = min(tk, _round_up(K, 128))
    tn_ = min(tn, _round_up(Cout, 128))
    M_p = _round_up(M, tm_)
    K_p = _round_up(K, tk_)
    C_p = _round_up(Cout, tn_)

    patches = jnp.pad(patches, ((0, M_p - M), (0, K_p - K)))
    w = jnp.pad(w, ((0, K_p - K), (0, C_p - Cout)))
    shift = jnp.pad(shift, ((0, 0), (0, C_p - Cout)))

    out = pl.pallas_call(
        _matmul_bn_relu_kernel,
        out_shape=jax.ShapeDtypeStruct((M_p, C_p), jnp.float32),
        grid_spec=pltpu.PrefetchScalarGridSpec(
            num_scalar_prefetch=0,
            grid=(M_p // tm_, C_p // tn_, K_p // tk_),
            in_specs=[
                pl.BlockSpec((tm_, tk_), lambda i, j, k: (i, k)),
                pl.BlockSpec((tk_, tn_), lambda i, j, k: (k, j)),
                pl.BlockSpec((1, tn_), lambda i, j, k: (0, j)),
            ],
            out_specs=pl.BlockSpec((tm_, tn_), lambda i, j, k: (i, j)),
            scratch_shapes=[pltpu.VMEM((tm_, tn_), jnp.float32)]),
        compiler_params=pltpu.CompilerParams(
            dimension_semantics=("parallel", "parallel", "arbitrary"),
            vmem_limit_bytes=32 * 1024 * 1024),
    )(patches, w, shift)

    out = out[:M, :Cout].reshape(N, Ho, Wo, Cout)
    return jnp.transpose(out, (0, 3, 1, 2))                       # NCHW


# ---------------------------------------------------------------------------
# Deterministic parameter construction (mirrors BasicConv2d, eval-mode BN)
# ---------------------------------------------------------------------------

def init_basic_conv2d(key, in_planes, out_planes, kernel_size, stride=1,
                      padding=0):
    if isinstance(kernel_size, int):
        kernel_size = (kernel_size, kernel_size)
    if isinstance(stride, int):
        stride = (stride, stride)
    if isinstance(padding, int):
        padding = (padding, padding)
    KH, KW = kernel_size

    k1, k2, k3, k4, k5 = jax.random.split(key, 5)
    w_oihw = 0.05 * jax.random.normal(k1, (out_planes, in_planes, KH, KW),
                                      jnp.float32)
    gamma = 1.0 + 0.1 * jax.random.normal(k2, (out_planes,), jnp.float32)
    beta = 0.05 * jax.random.normal(k3, (out_planes,), jnp.float32)
    mean = 0.05 * jax.random.normal(k4, (out_planes,), jnp.float32)
    var = 1.0 + 0.1 * jnp.abs(jax.random.normal(k5, (out_planes,), jnp.float32))

    scale = gamma * jax.lax.rsqrt(var + 1e-3)          # BN eval, eps=0.001
    shift = beta - mean * scale

    # (KH,KW,Cin,Cout) with BN scale folded into the output-channel columns.
    w_hwio = jnp.transpose(w_oihw, (2, 3, 1, 0)) * scale
    params = dict(
        w_mat=w_hwio.reshape(KH * KW * in_planes, out_planes
                             ).astype(jnp.bfloat16),   # kernel operand
        w_hwio=w_hwio,                                  # f32, reference only
        shift=shift.reshape(1, out_planes).astype(jnp.float32))
    config = dict(ksize=(KH, KW), stride=stride, padding=padding)
    return params, config


# ---------------------------------------------------------------------------
# Pure-JAX reference (f32) for correctness checking
# ---------------------------------------------------------------------------

def reference_forward(params, x_nchw, *, ksize, stride, padding):
    (KH, KW), (sh, sw), (ph, pw) = ksize, stride, padding
    x = jnp.transpose(x_nchw, (0, 2, 3, 1)).astype(jnp.float32)
    y = jax.lax.conv_general_dilated(
        x, params['w_hwio'],
        window_strides=(sh, sw),
        padding=((ph, ph), (pw, pw)),
        dimension_numbers=('NHWC', 'HWIO', 'NHWC'),
        precision=jax.lax.Precision.HIGHEST)
    y = jnp.maximum(y + params['shift'][0], 0.0)
    return jnp.transpose(y, (0, 3, 1, 2))


if __name__ == "__main__":
    key = jax.random.PRNGKey(0)
    in_planes, out_planes = 8, 64
    kernel_size, stride, padding = 3, 1, 1

    params, config = init_basic_conv2d(key, in_planes, out_planes,
                                       kernel_size, stride, padding)
    x = jax.random.normal(jax.random.fold_in(key, 1),
                          (2, in_planes, 16, 16), dtype=jnp.float32)

    fwd = jax.jit(functools.partial(basic_conv2d_forward, **config))
    y = jax.block_until_ready(fwd(params, x))

    assert y.shape == (2, out_planes, 16, 16), y.shape
    assert bool(jnp.isfinite(y).all())

    y_ref = reference_forward(params, x, **config)
    max_err = float(jnp.max(jnp.abs(y - y_ref)))
    assert max_err < 3e-2, f"max abs error vs reference: {max_err}"

    print("KERNEL_OK")
</pallas_src>

<mosaic_0001>
module attributes {stable_mosaic.version = 11 : i64} {
  func.func @_matmul_bn_relu_kernel(%arg0: i32, %arg1: i32, %arg2: i32, %arg3: memref<256x128xbf16, #tpu.memory_space<vmem>>, %arg4: memref<128x128xbf16, #tpu.memory_space<vmem>>, %arg5: memref<1x128xf32, #tpu.memory_space<vmem>>, %arg6: memref<256x128xf32, #tpu.memory_space<vmem>>, %arg7: memref<256x128xf32, #tpu.memory_space<vmem>>) attributes {dimension_semantics = [#tpu.dimension_semantics<parallel>, #tpu.dimension_semantics<parallel>, #tpu.dimension_semantics<arbitrary>], iteration_bounds = array<i64: 2, 1, 1>, scalar_prefetch = 0 : i64, scratch_operands = 1 : i64, tpu.core_type = #tpu.core_type<tc>, window_params = [{transform_indices = @transform_0, window_bounds = array<i64: 256, 128>}, {transform_indices = @transform_1, window_bounds = array<i64: 128, 128>}, {transform_indices = @transform_2, window_bounds = array<i64: 1, 128>}, {transform_indices = @transform_3, window_bounds = array<i64: 256, 128>}]} {
    %c0_i32 = arith.constant 0 : i32
    %0 = arith.cmpi eq, %arg2, %c0_i32 : i32
    %1 = arith.extui %0 : i1 to i32
    %c0_i32_0 = arith.constant 0 : i32
    %2 = arith.cmpi ne, %1, %c0_i32_0 : i32
    scf.if %2 {
      %cst_10 = arith.constant 0.000000e+00 : f32
      %12 = vector.broadcast %cst_10 : f32 to vector<256x128xf32>
      %c0_11 = arith.constant 0 : index
      %c0_12 = arith.constant 0 : index
      %13 = vector.load %arg7[%c0_11, %c0_12] : memref<256x128xf32, #tpu.memory_space<vmem>>, vector<256x128xf32>
      tpu.vector_store %arg7[%c0_11, %c0_12], %12 {strides = array<i32>} : memref<256x128xf32, #tpu.memory_space<vmem>>, vector<256x128xf32>,
    } else {
    }
    %c0 = arith.constant 0 : index
    %c0_1 = arith.constant 0 : index
    %3 = vector.load %arg7[%c0, %c0_1] : memref<256x128xf32, #tpu.memory_space<vmem>>, vector<256x128xf32>
    %c0_2 = arith.constant 0 : index
    %c0_3 = arith.constant 0 : index
    %4 = vector.load %arg3[%c0_2, %c0_3] : memref<256x128xbf16, #tpu.memory_space<vmem>>, vector<256x128xbf16>
    %c0_4 = arith.constant 0 : index
    %c0_5 = arith.constant 0 : index
    %5 = vector.load %arg4[%c0_4, %c0_5] : memref<128x128xbf16, #tpu.memory_space<vmem>>, vector<128x128xbf16>
    %cst = arith.constant dense<0.000000e+00> : vector<256x128xf32>
    %6 = tpu.matmul %4, %5, %cst {dimension_numbers = #tpu.dot_dimension_numbers<[1], [0], [0], [1], [0, 0, 1, 1], [], []>} : vector<256x128xbf16>, vector<128x128xbf16>, vector<256x128xf32> -> vector<256x128xf32>
    %7 = arith.addf %3, %6 : vector<256x128xf32>
    %c0_6 = arith.constant 0 : index
    %c0_7 = arith.constant 0 : index
    %8 = vector.load %arg7[%c0_6, %c0_7] : memref<256x128xf32, #tpu.memory_space<vmem>>, vector<256x128xf32>
    tpu.vector_store %arg7[%c0_6, %c0_7], %7 {strides = array<i32>} : memref<256x128xf32, #tpu.memory_space<vmem>>, vector<256x128xf32>,
    %c0_i32_8 = arith.constant 0 : i32
    %9 = arith.cmpi eq, %arg2, %c0_i32_8 : i32
    %10 = arith.extui %9 : i1 to i32
    %c0_i32_9 = arith.constant 0 : i32
    %11 = arith.cmpi ne, %10, %c0_i32_9 : i32
    scf.if %11 {
      %c0_10 = arith.constant 0 : index
      %c0_11 = arith.constant 0 : index
      %12 = vector.load %arg7[%c0_10, %c0_11] : memref<256x128xf32, #tpu.memory_space<vmem>>, vector<256x128xf32>
      %c0_12 = arith.constant 0 : index
      %c0_13 = arith.constant 0 : index
      %13 = vector.load %arg5[%c0_12, %c0_13] : memref<1x128xf32, #tpu.memory_space<vmem>>, vector<1x128xf32>
      %14 = vector.broadcast %13 : vector<1x128xf32> to vector<256x128xf32>
      %15 = arith.addf %12, %14 : vector<256x128xf32>
      %cst_14 = arith.constant 0.000000e+00 : f32
      %16 = vector.broadcast %cst_14 : f32 to vector<256x128xf32>
      %17 = arith.maximumf %15, %16 : vector<256x128xf32>
      %c0_15 = arith.constant 0 : index
      %c0_16 = arith.constant 0 : index
      %18 = vector.load %arg6[%c0_15, %c0_16] : memref<256x128xf32, #tpu.memory_space<vmem>>, vector<256x128xf32>
      tpu.vector_store %arg6[%c0_15, %c0_16], %17 {strides = array<i32>} : memref<256x128xf32, #tpu.memory_space<vmem>>, vector<256x128xf32>,
    } else {
    }
    return
  }
  func.func @transform_0(%arg0: i32, %arg1: i32, %arg2: i32) -> (i32, i32) {
    %c0_i32 = arith.constant 0 : i32
    return %arg0, %arg2 : i32, i32
  }
  func.func @transform_1(%arg0: i32, %arg1: i32, %arg2: i32) -> (i32, i32) {
    %c0_i32 = arith.constant 0 : i32
    return %arg2, %arg1 : i32, i32
  }
  func.func @transform_2(%arg0: i32, %arg1: i32, %arg2: i32) -> (i32, i32) {
    %c0_i32 = arith.constant 0 : i32
    %c0_i32_0 = arith.constant 0 : i32
    return %c0_i32, %arg1 : i32, i32
  }
  func.func @transform_3(%arg0: i32, %arg1: i32, %arg2: i32) -> (i32, i32) {
    %c0_i32 = arith.constant 0 : i32
    return %arg0, %arg1 : i32, i32
  }
}

</mosaic_0001>

<llo_original>
// kernel: basic_conv2d_forward.1
$region0: #{basic_conv2d_forward.1}
  #allocation0 [shape = 'u32[]', space=smem, size = 0x4, offset = 0x4, fixed_abs, tag = 'smem constant byte address 0x4 - core index']
  #allocation1 [shape = 'u32[144,128]{1,0:T(1,128)}', space=vmem, size = 0x12000, scoped, tag = 'internal scratch']
  #allocation2 [shape = 'f32[256,128]{1,0:T(8,128)}', space=vmem, size = 0x20000, scoped, tag = 'scratch operand']
  %s0 = inlined_call_operand.vmem [shape: bf16[512,128], index: 0, kind: input, shape index: {}]
  %s1 = inlined_call_operand.vmem [shape: bf16[128,128], index: 1, kind: input, shape index: {}]
  %s2 = inlined_call_operand.vmem [shape: f32[1,128], index: 2, kind: input, shape index: {}]
  %s3 = inlined_call_operand.hbm [shape: f32[512,128], index: 3, kind: output, shape index: {}]
  %s4 = sld [smem:[#allocation0]]
  $region53: #{basic_conv2d_forward.1} parent=0
    _
  %s6 = ssub.s32 1, %s4
  %s7 = scalar_select 0, %s6, %s4
  $region1: #{basic_conv2d_forward.1} parent=0
    #allocation3 [shape = 'u8[262144]{0}', space=vmem, size = 0x40000, scoped, tag = 'output window, operand 0']
    #allocation4 [shape = 's32[2]{0}', space=sflag, size = 0x8, scoped, tag = 'scoped memory for basic_conv2d_forward.1']
    %8 = vsyncpa [#allocation4], 0
    %s9 = scalar_lea.sflag [#allocation4], 1
    %10 = vsyncpa %s9, 0
    loop: start=0, step=1, limit=4
    $region2: #{basic_conv2d_forward.1} parent=1 // loop_pre_header
      _
    $region3: #{basic_conv2d_forward.1} parent=1 // loop_header
      %s12 = sphi 0, %s16
      %p13 = scmp.ge.s32.totalorder %s12, 4
      %s19 = sphi 0, %s38
      %s20 = sphi 0, %s34
      %s21 = sphi 0, %s30
      %s22 = sphi 0, %s19
      %s23 = sphi 0, %s20
      %s24 = sphi 0, %s21
      %s25 = sphi 0, %s22
      %s26 = sphi 0, %s23
      %s27 = sphi 0, %s24
      %s43 = sphi 0, %s45
      %s46 = sphi 0, %s43
      %s47 = sphi 0, %s46
      %s63 = sphi 0, %s47
      %s71 = sphi 0, %s73
      %s74 = sphi 0, %s71
      %s75 = sphi 0, %s74
      %s91 = sphi 0, %s75
      %s97 = sphi 0, %s99
      %s100 = sphi 0, %s97
      %s101 = sphi 0, %s100
      %s117 = sphi 0, %s101
      %s125 = sphi 0, %s127
      %s128 = sphi 0, %s125
      %s129 = sphi 0, %s128
      %s145 = sphi 0, %s129
    $region4: #{basic_conv2d_forward.1} parent=1 // loop_header_branch
      %15 = sbr.rel (%p13) target = $region8
    $region5: #{basic_conv2d_forward.1} parent=1 // loop_body
      %s17 = ssub.s32 %s12, 1
      %s18 = ssub.s32 %s12, 2
      %s28 = sadd.s32 1, %s21
      %p29 = scmp.ge.s32.totalorder %s28, 1
      %s30 = scalar_select %p29, 0, %s28
      %s31 = sadd.s32 1, %s20
      %s32 = scalar_select %p29, %s31, %s20
      %p33 = scmp.ge.s32.totalorder %s32, 1
      %s34 = scalar_select %p33, 0, %s32
      %s35 = sadd.s32 1, %s19
      %s36 = scalar_select %p33, %s35, %s19
      %p37 = scmp.ge.s32.totalorder %s36, 2
      %s38 = scalar_select %p37, 0, %s36
      %s39 = ssub.s32 %s19, %s38
      %s40 = ssub.s32 %s21, %s30
      %s41 = sor.u32 %s39, %s40
      %p42 = scmp.eq.s32.totalorder %s41, 0
      %s44 = sadd.s32 %s43, 1
      %s45 = scalar_select %p42, %s43, %s44
      %p48 = pneg %p42
      %p49 = scmp.eq.s32.totalorder %s12, 1
      %p50 = por %p48, %p49
      %p51 = scmp.ne.s32.totalorder %s43, %s46
      %p52 = scmp.eq.s32.totalorder %s12, 0
      %p53 = por %p51, %p52
      %p54 = scmp.ne.s32.totalorder %s43, %s46
      %p55 = scmp.eq.s32.totalorder %s17, 1
      %p56 = por %p54, %p55
      %p57 = scmp.ne.s32.totalorder %s46, %s47
      %p58 = scmp.eq.s32.totalorder %s17, 0
      %p59 = por %p57, %p58
      %p60 = scmp.ne.s32.totalorder %s46, %s47
      %p61 = scmp.eq.s32.totalorder %s18, 1
      %p62 = por %p60, %p61
      %p64 = scmp.ne.s32.totalorder %s47, %s63
      %p65 = scmp.eq.s32.totalorder %s18, 0
      %p66 = por %p64, %p65
      %s67 = ssub.s32 %s21, %s30
      %s68 = ssub.s32 %s20, %s34
      %s69 = sor.u32 %s67, %s68
      %p70 = scmp.eq.s32.totalorder %s69, 0
      %s72 = sadd.s32 %s71, 1
      %s73 = scalar_select %p70, %s71, %s72
      %p76 = pneg %p70
      %p77 = scmp.eq.s32.totalorder %s12, 1
      %p78 = por %p76, %p77
      %p79 = scmp.ne.s32.totalorder %s71, %s74
      %p80 = scmp.eq.s32.totalorder %s12, 0
      %p81 = por %p79, %p80
      %p82 = scmp.ne.s32.totalorder %s71, %s74
      %p83 = scmp.eq.s32.totalorder %s17, 1
      %p84 = por %p82, %p83
      %p85 = scmp.ne.s32.totalorder %s74, %s75
      %p86 = scmp.eq.s32.totalorder %s17, 0
      %p87 = por %p85, %p86
      %p88 = scmp.ne.s32.totalorder %s74, %s75
      %p89 = scmp.eq.s32.totalorder %s18, 1
      %p90 = por %p88, %p89
      %p92 = scmp.ne.s32.totalorder %s75, %s91
      %p93 = scmp.eq.s32.totalorder %s18, 0
      %p94 = por %p92, %p93
      %s95 = ssub.s32 %s20, %s34
      %p96 = scmp.eq.s32.totalorder %s95, 0
      %s98 = sadd.s32 %s97, 1
      %s99 = scalar_select %p96, %s97, %s98
      %p102 = pneg %p96
      %p103 = scmp.eq.s32.totalorder %s12, 1
      %p104 = por %p102, %p103
      %p105 = scmp.ne.s32.totalorder %s97, %s100
      %p106 = scmp.eq.s32.totalorder %s12, 0
      %p107 = por %p105, %p106
      %p108 = scmp.ne.s32.totalorder %s97, %s100
      %p109 = scmp.eq.s32.totalorder %s17, 1
      %p110 = por %p108, %p109
      %p111 = scmp.ne.s32.totalorder %s100, %s101
      %p112 = scmp.eq.s32.totalorder %s17, 0
      %p113 = por %p111, %p112
      %p114 = scmp.ne.s32.totalorder %s100, %s101
      %p115 = scmp.eq.s32.totalorder %s18, 1
      %p116 = por %p114, %p115
      %p118 = scmp.ne.s32.totalorder %s101, %s117
      %p119 = scmp.eq.s32.totalorder %s18, 0
      %p120 = por %p118, %p119
      %s121 = ssub.s32 %s19, %s38
      %s122 = ssub.s32 %s20, %s34
      %s123 = sor.u32 %s121, %s122
      %p124 = scmp.eq.s32.totalorder %s123, 0
      %s126 = sadd.s32 %s125, 1
      %s127 = scalar_select %p124, %s125, %s126
      %p130 = pneg %p124
      %p131 = scmp.eq.s32.totalorder %s12, 1
      %p132 = por %p130, %p131
      %p133 = scmp.ne.s32.totalorder %s125, %s128
      %p134 = scmp.eq.s32.totalorder %s12, 0
      %p135 = por %p133, %p134
      %p136 = scmp.ne.s32.totalorder %s125, %s128
      %p137 = scmp.eq.s32.totalorder %s17, 1
      %p138 = por %p136, %p137
      %p139 = scmp.ne.s32.totalorder %s128, %s129
      %p140 = scmp.eq.s32.totalorder %s17, 0
      %p141 = por %p139, %p140
      %p142 = scmp.ne.s32.totalorder %s128, %s129
      %p143 = scmp.eq.s32.totalorder %s18, 1
      %p144 = por %p142, %p143
      %p146 = scmp.ne.s32.totalorder %s129, %s145
      %p147 = scmp.eq.s32.totalorder %s18, 0
      %p148 = por %p146, %p147
      %p149 = scmp.le.s32.totalorder 1, %s12
      %p150 = scmp.lt.s32.totalorder %s12, 3
      %p151 = pnand %p149, %p150
      %p152 = pneg %p151
      // Predicated region
      $region9: #{basic_conv2d_forward.1} parent=5 // pred_check
        _
      $region10: #{basic_conv2d_forward.1} parent=5 // pred_check_branch
        %154 = sbr.rel (%p151) target = $region12
      $region11: #{basic_conv2d_forward.1} parent=5 // pred_region
        %s155 = ssub.s32 %s12, 1
        // Predicated region
        $region13: #{basic_conv2d_forward.1} parent=11 // pred_check
          %p156 = pneg %p87
        $region14: #{basic_conv2d_forward.1} parent=11 // pred_check_branch
          %158 = sbr.rel (%p156) target = $region16
        $region15: #{basic_conv2d_forward.1} parent=11 // pred_region
          %s159 = smul.u32 16, %s24
          %p160 = scmp.lt.s32.totalorder %s159, 15
          %s161 = scalar_select %p160, %s159, 15
          %p162 = scmp.lt.s32.totalorder %s23, 0
          %s163 = scalar_select %p162, %s23, 0
          %s164 = sadd.s32 %s163, %s161
          %s165 = smul.addr %s164, 4
          %s166 = scalar_lea.vmem %s1, %s165
          %s167 = smul.u32 16, %s24
        $region16: #{basic_conv2d_forward.1} parent=11 // pred_fallthru
          _
        // Predicated region
        $region17: #{basic_conv2d_forward.1} parent=11 // pred_check
          %p168 = pneg %p113
        $region18: #{basic_conv2d_forward.1} parent=11 // pred_check_branch
          %170 = sbr.rel (%p168) target = $region20
        $region19: #{basic_conv2d_forward.1} parent=11 // pred_region
          %p171 = scmp.lt.s32.totalorder %s23, 0
          %s172 = scalar_select %p171, %s23, 0
          %s173 = scalar_lea.vmem %s2, %s172
        $region20: #{basic_conv2d_forward.1} parent=11 // pred_fallthru
          _
      $region12: #{basic_conv2d_forward.1} parent=5 // pred_fallthru
        _
      %p174 = scmp.lt.s32.totalorder %s12, 2
      // Predicated region
      $region21: #{basic_conv2d_forward.1} parent=5 // pred_check
        %p175 = pneg %p174
      $region22: #{basic_conv2d_forward.1} parent=5 // pred_check_branch
        %177 = sbr.rel (%p175) target = $region24
      $region23: #{basic_conv2d_forward.1} parent=5 // pred_region
        // Predicated region
        $region25: #{basic_conv2d_forward.1} parent=23 // pred_check
          %p178 = pneg %p53
        $region26: #{basic_conv2d_forward.1} parent=23 // pred_check_branch
          %180 = sbr.rel (%p178) target = $region28
        $region27: #{basic_conv2d_forward.1} parent=23 // pred_region
          %s181 = smul.u32 32, %s19
          %p182 = scmp.lt.s32.totalorder %s181, 63
          %s183 = scalar_select %p182, %s181, 63
          %p184 = scmp.lt.s32.totalorder %s21, 0
          %s185 = scalar_select %p184, %s21, 0
          %s186 = sadd.s32 %s185, %s183
          %s187 = smul.addr %s186, 4
          %s188 = scalar_lea.vmem %s0, %s187
          %s189 = smul.u32 32, %s19
        $region28: #{basic_conv2d_forward.1} parent=23 // pred_fallthru
          _
      $region24: #{basic_conv2d_forward.1} parent=5 // pred_fallthru
        _
      %p190 = scmp.le.s32.totalorder 1, %s12
      %p191 = scmp.lt.s32.totalorder %s12, 3
      %p192 = pnand %p190, %p191
      %p193 = pneg %p192
      // Predicated region
      $region29: #{basic_conv2d_forward.1} parent=5 // pred_check
        _
      $region30: #{basic_conv2d_forward.1} parent=5 // pred_check_branch
        %195 = sbr.rel (%p192) target = $region32
      $region31: #{basic_conv2d_forward.1} parent=5 // pred_region
        %s196 = ssub.s32 %s12, 1
        %s197 = smul.u32 32, %s22
        %p198 = scmp.lt.s32.totalorder %s197, 63
        %s199 = scalar_select %p198, %s197, 63
        %p200 = scmp.lt.s32.totalorder %s24, 0
        %s201 = scalar_select %p200, %s24, 0
        %s202 = sadd.s32 %s201, %s199
        %s203 = smul.addr %s202, 4
        %s204 = scalar_lea.vmem %s0, %s203
        %p205 = pneg %p59
        %p206 = pneg %p56
        %s207 = smul.u32 16, %s24
        %p208 = scmp.lt.s32.totalorder %s207, 15
        %s209 = scalar_select %p208, %s207, 15
        %p210 = scmp.lt.s32.totalorder %s23, 0
        %s211 = scalar_select %p210, %s23, 0
        %s212 = sadd.s32 %s211, %s209
        %s213 = smul.addr %s212, 4
        %s214 = scalar_lea.vmem %s1, %s213
        %p215 = pneg %p87
        %p216 = pneg %p84
        %p217 = scmp.lt.s32.totalorder %s23, 0
        %s218 = scalar_select %p217, %s23, 0
        %s219 = scalar_lea.vmem %s2, %s218
        %p220 = pneg %p113
        %p221 = pneg %p110
        %p222 = pneg %p141
        %p223 = pneg %p138
        %s224 = sand.u32 %s128, 1
        %s225 = scalar_lea.sflag [#allocation4], %s224
        %s226 = sand.u32 %s128, 1
        %s227 = smul.addr %s226, 256
        %s228 = scalar_lea.vmem [#allocation3], %s227
        %s229 = smul.u32 32, %s22
        %p230 = scmp.lt.s32.totalorder %s229, 63
        %s231 = scalar_select %p230, %s229, 63
        %p232 = scmp.lt.s32.totalorder %s24, 0
        %s233 = scalar_select %p232, %s24, 0
        %s234 = sadd.s32 %s233, %s231
        %s235 = smul.addr %s234, 4
        %s236 = scalar_lea.vmem %s0, %s235
        %s237 = smul.u32 32, %s22
        %s238 = smul.u32 16, %s24
        %p239 = scmp.lt.s32.totalorder %s238, 15
        %s240 = scalar_select %p239, %s238, 15
        %p241 = scmp.lt.s32.totalorder %s23, 0
        %s242 = scalar_select %p241, %s23, 0
        %s243 = sadd.s32 %s242, %s240
        %s244 = smul.addr %s243, 4
        %s245 = scalar_lea.vmem %s1, %s244
        %s246 = smul.u32 16, %s24
        %p247 = scmp.lt.s32.totalorder %s23, 0
        %s248 = scalar_select %p247, %s23, 0
        %s249 = scalar_lea.vmem %s2, %s248
        %s250 = smul.u32 32, %s22
        %p252 = scmp.eq.s32.totalorder %s24, 0
        // Predicated region
        $region33: #{basic_conv2d_forward.1} parent=31 // pred_check
          %p253 = pneg %p252
        $region34: #{basic_conv2d_forward.1} parent=31 // pred_check_branch
          %255 = sbr.rel (%p253) target = $region36
        $region35: #{basic_conv2d_forward.1} parent=31 // pred_region
          %256 = vst [vmem:[#allocation2] sm:$0xff] 0.0
          %257 = vst [vmem:[#allocation2 + $0x8] sm:$0xff] 0.0
          %258 = vst [vmem:[#allocation2 + $0x10] sm:$0xff] 0.0
          %259 = vst [vmem:[#allocation2 + $0x18] sm:$0xff] 0.0
          %260 = vst [vmem:[#allocation2 + $0x20] sm:$0xff] 0.0
          %261 = vst [vmem:[#allocation2 + $0x28] sm:$0xff] 0.0
          %262 = vst [vmem:[#allocation2 + $0x30] sm:$0xff] 0.0
          %263 = vst [vmem:[#allocation2 + $0x38] sm:$0xff] 0.0
          %264 = vst [vmem:[#allocation2 + $0x40] sm:$0xff] 0.0
          %265 = vst [vmem:[#allocation2 + $0x48] sm:$0xff] 0.0
          %266 = vst [vmem:[#allocation2 + $0x50] sm:$0xff] 0.0
          %267 = vst [vmem:[#allocation2 + $0x58] sm:$0xff] 0.0
          %268 = vst [vmem:[#allocation2 + $0x60] sm:$0xff] 0.0
          %269 = vst [vmem:[#allocation2 + $0x68] sm:$0xff] 0.0
          %270 = vst [vmem:[#allocation2 + $0x70] sm:$0xff] 0.0
          %271 = vst [vmem:[#allocation2 + $0x78] sm:$0xff] 0.0
          %272 = vst [vmem:[#allocation2 + $0x80] sm:$0xff] 0.0
          %273 = vst [vmem:[#allocation2 + $0x88] sm:$0xff] 0.0
          %274 = vst [vmem:[#allocation2 + $0x90] sm:$0xff] 0.0
          %275 = vst [vmem:[#allocation2 + $0x98] sm:$0xff] 0.0
          %276 = vst [vmem:[#allocation2 + $0xa0] sm:$0xff] 0.0
          %277 = vst [vmem:[#allocation2 + $0xa8] sm:$0xff] 0.0
          %278 = vst [vmem:[#allocation2 + $0xb0] sm:$0xff] 0.0
          %279 = vst [vmem:[#allocation2 + $0xb8] sm:$0xff] 0.0
          %280 = vst [vmem:[#allocation2 + $0xc0] sm:$0xff] 0.0
          %281 = vst [vmem:[#allocation2 + $0xc8] sm:$0xff] 0.0
          %282 = vst [vmem:[#allocation2 + $0xd0] sm:$0xff] 0.0
          %283 = vst [vmem:[#allocation2 + $0xd8] sm:$0xff] 0.0
          %284 = vst [vmem:[#allocation2 + $0xe0] sm:$0xff] 0.0
          %285 = vst [vmem:[#allocation2 + $0xe8] sm:$0xff] 0.0
          %286 = vst [vmem:[#allocation2 + $0xf0] sm:$0xff] 0.0
          %287 = vst [vmem:[#allocation2 + $0xf8] sm:$0xff] 0.0
        $region36: #{basic_conv2d_forward.1} parent=31 // pred_fallthru
          _
        %v288 = vld [vmem:[#allocation2] sm:$0xff]
        %v289 = vld [vmem:[#allocation2 + $0x8] sm:$0xff]
        %v290 = vld [vmem:[#allocation2 + $0x10] sm:$0xff]
        %v291 = vld [vmem:[#allocation2 + $0x18] sm:$0xff]
        %v292 = vld [vmem:[#allocation2 + $0x20] sm:$0xff]
        %v293 = vld [vmem:[#allocation2 + $0x28] sm:$0xff]
        %v294 = vld [vmem:[#allocation2 + $0x30] sm:$0xff]
        %v295 = vld [vmem:[#allocation2 + $0x38] sm:$0xff]
        %v296 = vld [vmem:[#allocation2 + $0x40] sm:$0xff]
        %v297 = vld [vmem:[#allocation2 + $0x48] sm:$0xff]
        %v298 = vld [vmem:[#allocation2 + $0x50] sm:$0xff]
        %v299 = vld [vmem:[#allocation2 + $0x58] sm:$0xff]
        %v300 = vld [vmem:[#allocation2 + $0x60] sm:$0xff]
        %v301 = vld [vmem:[#allocation2 + $0x68] sm:$0xff]
        %v302 = vld [vmem:[#allocation2 + $0x70] sm:$0xff]
        %v303 = vld [vmem:[#allocation2 + $0x78] sm:$0xff]
        %v304 = vld [vmem:[#allocation2 + $0x80] sm:$0xff]
        %v305 = vld [vmem:[#allocation2 + $0x88] sm:$0xff]
        %v306 = vld [vmem:[#allocation2 + $0x90] sm:$0xff]
        %v307 = vld [vmem:[#allocation2 + $0x98] sm:$0xff]
        %v308 = vld [vmem:[#allocation2 + $0xa0] sm:$0xff]
        %v309 = vld [vmem:[#allocation2 + $0xa8] sm:$0xff]
        %v310 = vld [vmem:[#allocation2 + $0xb0] sm:$0xff]
        %v311 = vld [vmem:[#allocation2 + $0xb8] sm:$0xff]
        %v312 = vld [vmem:[#allocation2 + $0xc0] sm:$0xff]
        %v313 = vld [vmem:[#allocation2 + $0xc8] sm:$0xff]
        %v314 = vld [vmem:[#allocation2 + $0xd0] sm:$0xff]
        %v315 = vld [vmem:[#allocation2 + $0xd8] sm:$0xff]
        %v316 = vld [vmem:[#allocation2 + $0xe0] sm:$0xff]
        %v317 = vld [vmem:[#allocation2 + $0xe8] sm:$0xff]
        %v318 = vld [vmem:[#allocation2 + $0xf0] sm:$0xff]
        %v319 = vld [vmem:[#allocation2 + $0xf8] sm:$0xff]
        %v320 = vld [vmem:[%s236] sm:$0xf]
        %v321 = vld [vmem:[%s236 + $0x4] sm:$0xf]
        %v322 = vld [vmem:[%s236 + $0x8] sm:$0xf]
        %v323 = vld [vmem:[%s236 + $0xc] sm:$0xf]
        %v324 = vld [vmem:[%s236 + $0x10] sm:$0xf]
        %v325 = vld [vmem:[%s236 + $0x14] sm:$0xf]
        %v326 = vld [vmem:[%s236 + $0x18] sm:$0xf]
        %v327 = vld [vmem:[%s236 + $0x1c] sm:$0xf]
        %v328 = vld [vmem:[%s236 + $0x20] sm:$0xf]
        %v329 = vld [vmem:[%s236 + $0x24] sm:$0xf]
        %v330 = vld [vmem:[%s236 + $0x28] sm:$0xf]
        %v331 = vld [vmem:[%s236 + $0x2c] sm:$0xf]
        %v332 = vld [vmem:[%s236 + $0x30] sm:$0xf]
        %v333 = vld [vmem:[%s236 + $0x34] sm:$0xf]
        %v334 = vld [vmem:[%s236 + $0x38] sm:$0xf]
        %v335 = vld [vmem:[%s236 + $0x3c] sm:$0xf]
        %v336 = vld [vmem:[%s236 + $0x40] sm:$0xf]
        %v337 = vld [vmem:[%s236 + $0x44] sm:$0xf]
        %v338 = vld [vmem:[%s236 + $0x48] sm:$0xf]
        %v339 = vld [vmem:[%s236 + $0x4c] sm:$0xf]
        %v340 = vld [vmem:[%s236 + $0x50] sm:$0xf]
        %v341 = vld [vmem:[%s236 + $0x54] sm:$0xf]
        %v342 = vld [vmem:[%s236 + $0x58] sm:$0xf]
        %v343 = vld [vmem:[%s236 + $0x5c] sm:$0xf]
        %v344 = vld [vmem:[%s236 + $0x60] sm:$0xf]
        %v345 = vld [vmem:[%s236 + $0x64] sm:$0xf]
        %v346 = vld [vmem:[%s236 + $0x68] sm:$0xf]
        %v347 = vld [vmem:[%s236 + $0x6c] sm:$0xf]
        %v348 = vld [vmem:[%s236 + $0x70] sm:$0xf]
        %v349 = vld [vmem:[%s236 + $0x74] sm:$0xf]
        %v350 = vld [vmem:[%s236 + $0x78] sm:$0xf]
        %v351 = vld [vmem:[%s236 + $0x7c] sm:$0xf]
        %v352 = vld [vmem:[%s245] sm:$0xf]
        %v353 = vld [vmem:[%s245 + $0x4] sm:$0xf]
        %v354 = vld [vmem:[%s245 + $0x8] sm:$0xf]
        %v355 = vld [vmem:[%s245 + $0xc] sm:$0xf]
        %v356 = vld [vmem:[%s245 + $0x10] sm:$0xf]
        %v357 = vld [vmem:[%s245 + $0x14] sm:$0xf]
        %v358 = vld [vmem:[%s245 + $0x18] sm:$0xf]
        %v359 = vld [vmem:[%s245 + $0x1c] sm:$0xf]
        %v360 = vld [vmem:[%s245 + $0x20] sm:$0xf]
        %v361 = vld [vmem:[%s245 + $0x24] sm:$0xf]
        %v362 = vld [vmem:[%s245 + $0x28] sm:$0xf]
        %v363 = vld [vmem:[%s245 + $0x2c] sm:$0xf]
        %v364 = vld [vmem:[%s245 + $0x30] sm:$0xf]
        %v365 = vld [vmem:[%s245 + $0x34] sm:$0xf]
        %v366 = vld [vmem:[%s245 + $0x38] sm:$0xf]
        %v367 = vld [vmem:[%s245 + $0x3c] sm:$0xf]
        %v400 = vunpack.c.l.b16 %v320
        %v401 = vunpack.c.l.b16 %v321
        %v402 = vunpack.c.l.b16 %v322
        %v403 = vunpack.c.l.b16 %v323
        %v404 = vunpack.c.l.b16 %v324
        %v405 = vunpack.c.l.b16 %v325
        %v406 = vunpack.c.l.b16 %v326
        %v407 = vunpack.c.l.b16 %v327
        %v408 = vunpack.c.l.b16 %v328
        %v409 = vunpack.c.l.b16 %v329
        %v410 = vunpack.c.l.b16 %v330
        %v411 = vunpack.c.l.b16 %v331
        %v412 = vunpack.c.l.b16 %v332
        %v413 = vunpack.c.l.b16 %v333
        %v414 = vunpack.c.l.b16 %v334
        %v415 = vunpack.c.l.b16 %v335
        %v416 = vunpack.c.l.b16 %v336
        %v417 = vunpack.c.l.b16 %v337
        %v418 = vunpack.c.l.b16 %v338
        %v419 = vunpack.c.l.b16 %v339
        %v420 = vunpack.c.l.b16 %v340
        %v421 = vunpack.c.l.b16 %v341
        %v422 = vunpack.c.l.b16 %v342
        %v423 = vunpack.c.l.b16 %v343
        %v424 = vunpack.c.l.b16 %v344
        %v425 = vunpack.c.l.b16 %v345
        %v426 = vunpack.c.l.b16 %v346
        %v427 = vunpack.c.l.b16 %v347
        %v428 = vunpack.c.l.b16 %v348
        %v429 = vunpack.c.l.b16 %v349
        %v430 = vunpack.c.l.b16 %v350
        %v431 = vunpack.c.l.b16 %v351
        %v432 = vpack.c.b16 %v401, %v400
        %v433 = vpack.c.b16 %v403, %v402
        %v434 = vpack.c.b16 %v405, %v404
        %v435 = vpack.c.b16 %v407, %v406
        %v436 = vpack.c.b16 %v409, %v408
        %v437 = vpack.c.b16 %v411, %v410
        %v438 = vpack.c.b16 %v413, %v412
        %v439 = vpack.c.b16 %v415, %v414
        %v440 = vpack.c.b16 %v417, %v416
        %v441 = vpack.c.b16 %v419, %v418
        %v442 = vpack.c.b16 %v421, %v420
        %v443 = vpack.c.b16 %v423, %v422
        %v444 = vpack.c.b16 %v425, %v424
        %v445 = vpack.c.b16 %v427, %v426
        %v446 = vpack.c.b16 %v429, %v428
        %v447 = vpack.c.b16 %v431, %v430
        %v480 = vunpack.c.l.b16 %v352
        %v481 = vunpack.c.l.b16 %v353
        %v482 = vunpack.c.l.b16 %v354
        %v483 = vunpack.c.l.b16 %v355
        %v484 = vunpack.c.l.b16 %v356
        %v485 = vunpack.c.l.b16 %v357
        %v486 = vunpack.c.l.b16 %v358
        %v487 = vunpack.c.l.b16 %v359
        %v488 = vunpack.c.l.b16 %v360
        %v489 = vunpack.c.l.b16 %v361
        %v490 = vunpack.c.l.b16 %v362
        %v491 = vunpack.c.l.b16 %v363
        %v492 = vunpack.c.l.b16 %v364
        %v493 = vunpack.c.l.b16 %v365
        %v494 = vunpack.c.l.b16 %v366
        %v495 = vunpack.c.l.b16 %v367
        %v496 = vpack.c.b16 %v481, %v480
        %v497 = vpack.c.b16 %v483, %v482
        %v498 = vpack.c.b16 %v485, %v484
        %v499 = vpack.c.b16 %v487, %v486
        %v500 = vpack.c.b16 %v489, %v488
        %v501 = vpack.c.b16 %v491, %v490
        %v502 = vpack.c.b16 %v493, %v492
        %v503 = vpack.c.b16 %v495, %v494
        %512 = vmatprep.subr.bf16.mxu0 0
        %513 = vmatpush1.bf16.msra.mxu0 %v503
        %514 = vmatprep.subr.bf16.mxu0 0
        %515 = vmatpush1.bf16.msra.mxu0 %v502
        %516 = vmatprep.subr.bf16.mxu0 0
        %517 = vmatpush1.bf16.msra.mxu0 %v501
        %518 = vmatprep.subr.bf16.mxu0 0
        %519 = vmatpush1.bf16.msra.mxu0 %v500
        %520 = vmatprep.subr.bf16.mxu0 0
        %521 = vmatpush1.bf16.msra.mxu0 %v499
        %522 = vmatprep.subr.bf16.mxu0 0
        %523 = vmatpush1.bf16.msra.mxu0 %v498
        %524 = vmatprep.subr.bf16.mxu0 0
        %525 = vmatpush1.bf16.msra.mxu0 %v497
        %526 = vmatprep.subr.bf16.mxu0 0
        %527 = vmatpush1.bf16.msra.mxu0 %v496
        %528 = vmatprep.subr.bf16.mxu0 0
        %529 = vmatpush2.bf16.msra.mxu0 0
        %530 = vmatprep.subr.bf16.mxu0 0
        %531 = vmatpush2.bf16.msra.mxu0 0
        %532 = vmatprep.subr.bf16.mxu0 0
        %533 = vmatpush2.bf16.msra.mxu0 0
        %534 = vmatprep.subr.bf16.mxu0 0
        %535 = vmatpush2.bf16.msra.mxu0 0
        %536 = vmatprep.subr.bf16.mxu0 0
        %537 = vmatpush2.bf16.msra.mxu0 0
        %538 = vmatprep.subr.bf16.mxu0 0
        %539 = vmatpush2.bf16.msra.mxu0 0
        %540 = vmatprep.subr.bf16.mxu0 0
        %541 = vmatpush2.bf16.msra.mxu0 0
        %542 = vmatprep.subr.bf16.mxu0 0
        %543 = vmatpush2.bf16.msra.mxu0 0
        %544 = vmatprep.mubr.bf16.mxu0 0
        %545 = vmatmul.mubr.bf16.gmra.mxu0 %v432
        %v546 = vpop.f32.mrf.mxu0
        %v547 = vadd.f32 0.0, %v546
        %v548 = vpop.f32.mrf.mxu0
        %v549 = vpop.f32.mrf.mxu0
        %v550 = vadd.f32 0.0, %v549
        %v551 = vpop.f32.mrf.mxu0
        %552 = vmatprep.mubr.bf16.mxu0 0
        %553 = vmatmul.mubr.bf16.gmra.mxu0 %v433
        %v554 = vpop.f32.mrf.mxu0
        %v555 = vadd.f32 0.0, %v554
        %v556 = vpop.f32.mrf.mxu0
        %v557 = vpop.f32.mrf.mxu0
        %v558 = vadd.f32 0.0, %v557
        %v559 = vpop.f32.mrf.mxu0
        %560 = vmatprep.mubr.bf16.mxu0 0
        %561 = vmatmul.mubr.bf16.gmra.mxu0 %v434
        %v562 = vpop.f32.mrf.mxu0
        %v563 = vadd.f32 0.0, %v562
        %v564 = vpop.f32.mrf.mxu0
        %v565 = vpop.f32.mrf.mxu0
        %v566 = vadd.f32 0.0, %v565
        %v567 = vpop.f32.mrf.mxu0
        %568 = vmatprep.mubr.bf16.mxu0 0
        %569 = vmatmul.mubr.bf16.gmra.mxu0 %v435
        %v570 = vpop.f32.mrf.mxu0
        %v571 = vadd.f32 0.0, %v570
        %v572 = vpop.f32.mrf.mxu0
        %v573 = vpop.f32.mrf.mxu0
        %v574 = vadd.f32 0.0, %v573
        %v575 = vpop.f32.mrf.mxu0
        %576 = vmatprep.mubr.bf16.mxu0 0
        %577 = vmatmul.mubr.bf16.gmra.mxu0 %v436
        %v578 = vpop.f32.mrf.mxu0
        %v579 = vadd.f32 0.0, %v578
        %v580 = vpop.f32.mrf.mxu0
        %v581 = vpop.f32.mrf.mxu0
        %v582 = vadd.f32 0.0, %v581
        %v583 = vpop.f32.mrf.mxu0
        %584 = vmatprep.mubr.bf16.mxu0 0
        %585 = vmatmul.mubr.bf16.gmra.mxu0 %v437
        %v586 = vpop.f32.mrf.mxu0
        %v587 = vadd.f32 0.0, %v586
        %v588 = vpop.f32.mrf.mxu0
        %v589 = vpop.f32.mrf.mxu0
        %v590 = vadd.f32 0.0, %v589
        %v591 = vpop.f32.mrf.mxu0
        %592 = vmatprep.mubr.bf16.mxu0 0
        %593 = vmatmul.mubr.bf16.gmra.mxu0 %v438
        %v594 = vpop.f32.mrf.mxu0
        %v595 = vadd.f32 0.0, %v594
        %v596 = vpop.f32.mrf.mxu0
        %v597 = vpop.f32.mrf.mxu0
        %v598 = vadd.f32 0.0, %v597
        %v599 = vpop.f32.mrf.mxu0
        %600 = vmatprep.mubr.bf16.mxu0 0
        %601 = vmatmul.mubr.bf16.gmra.mxu0 %v439
        %v602 = vpop.f32.mrf.mxu0
        %v603 = vadd.f32 0.0, %v602
        %v604 = vpop.f32.mrf.mxu0
        %v605 = vpop.f32.mrf.mxu0
        %v606 = vadd.f32 0.0, %v605
        %v607 = vpop.f32.mrf.mxu0
        %608 = vmatprep.mubr.bf16.mxu0 0
        %609 = vmatmul.mubr.bf16.gmra.mxu0 %v440
        %v610 = vpop.f32.mrf.mxu0
        %v611 = vadd.f32 0.0, %v610
        %v612 = vpop.f32.mrf.mxu0
        %v613 = vpop.f32.mrf.mxu0
        %v614 = vadd.f32 0.0, %v613
        %v615 = vpop.f32.mrf.mxu0
        %616 = vmatprep.mubr.bf16.mxu0 0
        %617 = vmatmul.mubr.bf16.gmra.mxu0 %v441
        %v618 = vpop.f32.mrf.mxu0
        %v619 = vadd.f32 0.0, %v618
        %v620 = vpop.f32.mrf.mxu0
        %v621 = vpop.f32.mrf.mxu0
        %v622 = vadd.f32 0.0, %v621
        %v623 = vpop.f32.mrf.mxu0
        %624 = vmatprep.mubr.bf16.mxu0 0
        %625 = vmatmul.mubr.bf16.gmra.mxu0 %v442
        %v626 = vpop.f32.mrf.mxu0
        %v627 = vadd.f32 0.0, %v626
        %v628 = vpop.f32.mrf.mxu0
        %v629 = vpop.f32.mrf.mxu0
        %v630 = vadd.f32 0.0, %v629
        %v631 = vpop.f32.mrf.mxu0
        %632 = vmatprep.mubr.bf16.mxu0 0
        %633 = vmatmul.mubr.bf16.gmra.mxu0 %v443
        %v634 = vpop.f32.mrf.mxu0
        %v635 = vadd.f32 0.0, %v634
        %v636 = vpop.f32.mrf.mxu0
        %v637 = vpop.f32.mrf.mxu0
        %v638 = vadd.f32 0.0, %v637
        %v639 = vpop.f32.mrf.mxu0
        %640 = vmatprep.mubr.bf16.mxu0 0
        %641 = vmatmul.mubr.bf16.gmra.mxu0 %v444
        %v642 = vpop.f32.mrf.mxu0
        %v643 = vadd.f32 0.0, %v642
        %v644 = vpop.f32.mrf.mxu0
        %v645 = vpop.f32.mrf.mxu0
        %v646 = vadd.f32 0.0, %v645
        %v647 = vpop.f32.mrf.mxu0
        %648 = vmatprep.mubr.bf16.mxu0 0
        %649 = vmatmul.mubr.bf16.gmra.mxu0 %v445
        %v650 = vpop.f32.mrf.mxu0
        %v651 = vadd.f32 0.0, %v650
        %v652 = vpop.f32.mrf.mxu0
        %v653 = vpop.f32.mrf.mxu0
        %v654 = vadd.f32 0.0, %v653
        %v655 = vpop.f32.mrf.mxu0
        %656 = vmatprep.mubr.bf16.mxu0 0
        %657 = vmatmul.mubr.bf16.gmra.mxu0 %v446
        %v658 = vpop.f32.mrf.mxu0
        %v659 = vadd.f32 0.0, %v658
        %v660 = vpop.f32.mrf.mxu0
        %v661 = vpop.f32.mrf.mxu0
        %v662 = vadd.f32 0.0, %v661
        %v663 = vpop.f32.mrf.mxu0
        %664 = vmatprep.mubr.bf16.mxu0 0
        %665 = vmatmul.mubr.bf16.gmra.mxu0 %v447
        %v666 = vpop.f32.mrf.mxu0
        %v667 = vadd.f32 0.0, %v666
        %v668 = vpop.f32.mrf.mxu0
        %v669 = vpop.f32.mrf.mxu0
        %v670 = vadd.f32 0.0, %v669
        %v671 = vpop.f32.mrf.mxu0
        %672 = vdwg.mxu0
        %v673 = vadd.f32 %v288, %v547
        %v674 = vadd.f32 %v289, %v550
        %v675 = vadd.f32 %v290, %v555
        %v676 = vadd.f32 %v291, %v558
        %v677 = vadd.f32 %v292, %v563
        %v678 = vadd.f32 %v293, %v566
        %v679 = vadd.f32 %v294, %v571
        %v680 = vadd.f32 %v295, %v574
        %v681 = vadd.f32 %v296, %v579
        %v682 = vadd.f32 %v297, %v582
        %v683 = vadd.f32 %v298, %v587
        %v684 = vadd.f32 %v299, %v590
        %v685 = vadd.f32 %v300, %v595
        %v686 = vadd.f32 %v301, %v598
        %v687 = vadd.f32 %v302, %v603
        %v688 = vadd.f32 %v303, %v606
        %v689 = vadd.f32 %v304, %v611
        %v690 = vadd.f32 %v305, %v614
        %v691 = vadd.f32 %v306, %v619
        %v692 = vadd.f32 %v307, %v622
        %v693 = vadd.f32 %v308, %v627
        %v694 = vadd.f32 %v309, %v630
        %v695 = vadd.f32 %v310, %v635
        %v696 = vadd.f32 %v311, %v638
        %v697 = vadd.f32 %v312, %v643
        %v698 = vadd.f32 %v313, %v646
        %v699 = vadd.f32 %v314, %v651
        %v700 = vadd.f32 %v315, %v654
        %v701 = vadd.f32 %v316, %v659
        %v702 = vadd.f32 %v317, %v662
        %v703 = vadd.f32 %v318, %v667
        %v704 = vadd.f32 %v319, %v670
        %705 = vst [vmem:[#allocation2] sm:$0xff] %v673
        %706 = vst [vmem:[#allocation2 + $0x8] sm:$0xff] %v674
        %707 = vst [vmem:[#allocation2 + $0x10] sm:$0xff] %v675
        %708 = vst [vmem:[#allocation2 + $0x18] sm:$0xff] %v676
        %709 = vst [vmem:[#allocation2 + $0x20] sm:$0xff] %v677
        %710 = vst [vmem:[#allocation2 + $0x28] sm:$0xff] %v678
        %711 = vst [vmem:[#allocation2 + $0x30] sm:$0xff] %v679
        %712 = vst [vmem:[#allocation2 + $0x38] sm:$0xff] %v680
        %713 = vst [vmem:[#allocation2 + $0x40] sm:$0xff] %v681
        %714 = vst [vmem:[#allocation2 + $0x48] sm:$0xff] %v682
        %715 = vst [vmem:[#allocation2 + $0x50] sm:$0xff] %v683
        %716 = vst [vmem:[#allocation2 + $0x58] sm:$0xff] %v684
        %717 = vst [vmem:[#allocation2 + $0x60] sm:$0xff] %v685
        %718 = vst [vmem:[#allocation2 + $0x68] sm:$0xff] %v686
        %719 = vst [vmem:[#allocation2 + $0x70] sm:$0xff] %v687
        %720 = vst [vmem:[#allocation2 + $0x78] sm:$0xff] %v688
        %721 = vst [vmem:[#allocation2 + $0x80] sm:$0xff] %v689
        %722 = vst [vmem:[#allocation2 + $0x88] sm:$0xff] %v690
        %723 = vst [vmem:[#allocation2 + $0x90] sm:$0xff] %v691
        %724 = vst [vmem:[#allocation2 + $0x98] sm:$0xff] %v692
        %725 = vst [vmem:[#allocation2 + $0xa0] sm:$0xff] %v693
        %726 = vst [vmem:[#allocation2 + $0xa8] sm:$0xff] %v694
        %727 = vst [vmem:[#allocation2 + $0xb0] sm:$0xff] %v695
        %728 = vst [vmem:[#allocation2 + $0xb8] sm:$0xff] %v696
        %729 = vst [vmem:[#allocation2 + $0xc0] sm:$0xff] %v697
        %730 = vst [vmem:[#allocation2 + $0xc8] sm:$0xff] %v698
        %731 = vst [vmem:[#allocation2 + $0xd0] sm:$0xff] %v699
        %732 = vst [vmem:[#allocation2 + $0xd8] sm:$0xff] %v700
        %733 = vst [vmem:[#allocation2 + $0xe0] sm:$0xff] %v701
        %734 = vst [vmem:[#allocation2 + $0xe8] sm:$0xff] %v702
        %735 = vst [vmem:[#allocation2 + $0xf0] sm:$0xff] %v703
        %736 = vst [vmem:[#allocation2 + $0xf8] sm:$0xff] %v704
        // Predicated region
        $region37: #{basic_conv2d_forward.1} parent=31 // pred_check
          %p737 = pneg %p252
        $region38: #{basic_conv2d_forward.1} parent=31 // pred_check_branch
          %739 = sbr.rel (%p737) target = $region40
        $region39: #{basic_conv2d_forward.1} parent=31 // pred_region
          %v740 = vld [vmem:[#allocation2] sm:$0xff]
          %v741 = vld [vmem:[#allocation2 + $0x8] sm:$0xff]
          %v742 = vld [vmem:[#allocation2 + $0x10] sm:$0xff]
          %v743 = vld [vmem:[#allocation2 + $0x18] sm:$0xff]
          %v744 = vld [vmem:[#allocation2 + $0x20] sm:$0xff]
          %v745 = vld [vmem:[#allocation2 + $0x28] sm:$0xff]
          %v746 = vld [vmem:[#allocation2 + $0x30] sm:$0xff]
          %v747 = vld [vmem:[#allocation2 + $0x38] sm:$0xff]
          %v748 = vld [vmem:[#allocation2 + $0x40] sm:$0xff]
          %v749 = vld [vmem:[#allocation2 + $0x48] sm:$0xff]
          %v750 = vld [vmem:[#allocation2 + $0x50] sm:$0xff]
          %v751 = vld [vmem:[#allocation2 + $0x58] sm:$0xff]
          %v752 = vld [vmem:[#allocation2 + $0x60] sm:$0xff]
          %v753 = vld [vmem:[#allocation2 + $0x68] sm:$0xff]
          %v754 = vld [vmem:[#allocation2 + $0x70] sm:$0xff]
          %v755 = vld [vmem:[#allocation2 + $0x78] sm:$0xff]
          %v756 = vld [vmem:[#allocation2 + $0x80] sm:$0xff]
          %v757 = vld [vmem:[#allocation2 + $0x88] sm:$0xff]
          %v758 = vld [vmem:[#allocation2 + $0x90] sm:$0xff]
          %v759 = vld [vmem:[#allocation2 + $0x98] sm:$0xff]
          %v760 = vld [vmem:[#allocation2 + $0xa0] sm:$0xff]
          %v761 = vld [vmem:[#allocation2 + $0xa8] sm:$0xff]
          %v762 = vld [vmem:[#allocation2 + $0xb0] sm:$0xff]
          %v763 = vld [vmem:[#allocation2 + $0xb8] sm:$0xff]
          %v764 = vld [vmem:[#allocation2 + $0xc0] sm:$0xff]
          %v765 = vld [vmem:[#allocation2 + $0xc8] sm:$0xff]
          %v766 = vld [vmem:[#allocation2 + $0xd0] sm:$0xff]
          %v767 = vld [vmem:[#allocation2 + $0xd8] sm:$0xff]
          %v768 = vld [vmem:[#allocation2 + $0xe0] sm:$0xff]
          %v769 = vld [vmem:[#allocation2 + $0xe8] sm:$0xff]
          %v770 = vld [vmem:[#allocation2 + $0xf0] sm:$0xff]
          %v771 = vld [vmem:[#allocation2 + $0xf8] sm:$0xff]
          %v772 = vld [vmem:[%s249] sm:$0x1]
          %v774 = vlaneseq
          %v775 = vshrl.u32 %v774, 7
          %v776 = vsub.s32 0, %v775
          %v777 = vrot.slane %v772, %v776
          %v779 = vadd.f32 %v740, %v777
          %v780 = vadd.f32 %v741, %v777
          %v781 = vadd.f32 %v742, %v777
          %v782 = vadd.f32 %v743, %v777
          %v783 = vadd.f32 %v744, %v777
          %v784 = vadd.f32 %v745, %v777
          %v785 = vadd.f32 %v746, %v777
          %v786 = vadd.f32 %v747, %v777
          %v787 = vadd.f32 %v748, %v777
          %v788 = vadd.f32 %v749, %v777
          %v789 = vadd.f32 %v750, %v777
          %v790 = vadd.f32 %v751, %v777
          %v791 = vadd.f32 %v752, %v777
          %v792 = vadd.f32 %v753, %v777
          %v793 = vadd.f32 %v754, %v777
          %v794 = vadd.f32 %v755, %v777
          %v795 = vadd.f32 %v756, %v777
          %v796 = vadd.f32 %v757, %v777
          %v797 = vadd.f32 %v758, %v777
          %v798 = vadd.f32 %v759, %v777
          %v799 = vadd.f32 %v760, %v777
          %v800 = vadd.f32 %v761, %v777
          %v801 = vadd.f32 %v762, %v777
          %v802 = vadd.f32 %v763, %v777
          %v803 = vadd.f32 %v764, %v777
          %v804 = vadd.f32 %v765, %v777
          %v805 = vadd.f32 %v766, %v777
          %v806 = vadd.f32 %v767, %v777
          %v807 = vadd.f32 %v768, %v777
          %v808 = vadd.f32 %v769, %v777
          %v809 = vadd.f32 %v770, %v777
          %v810 = vadd.f32 %v771, %v777
          %v811 = vmax.f32 %v779, 0.0
          %v812 = vmax.f32 %v780, 0.0
          %v813 = vmax.f32 %v781, 0.0
          %v814 = vmax.f32 %v782, 0.0
          %v815 = vmax.f32 %v783, 0.0
          %v816 = vmax.f32 %v784, 0.0
          %v817 = vmax.f32 %v785, 0.0
          %v818 = vmax.f32 %v786, 0.0
          %v819 = vmax.f32 %v787, 0.0
          %v820 = vmax.f32 %v788, 0.0
          %v821 = vmax.f32 %v789, 0.0
          %v822 = vmax.f32 %v790, 0.0
          %v823 = vmax.f32 %v791, 0.0
          %v824 = vmax.f32 %v792, 0.0
          %v825 = vmax.f32 %v793, 0.0
          %v826 = vmax.f32 %v794, 0.0
          %v827 = vmax.f32 %v795, 0.0
          %v828 = vmax.f32 %v796, 0.0
          %v829 = vmax.f32 %v797, 0.0
          %v830 = vmax.f32 %v798, 0.0
          %v831 = vmax.f32 %v799, 0.0
          %v832 = vmax.f32 %v800, 0.0
          %v833 = vmax.f32 %v801, 0.0
          %v834 = vmax.f32 %v802, 0.0
          %v835 = vmax.f32 %v803, 0.0
          %v836 = vmax.f32 %v804, 0.0
          %v837 = vmax.f32 %v805, 0.0
          %v838 = vmax.f32 %v806, 0.0
          %v839 = vmax.f32 %v807, 0.0
          %v840 = vmax.f32 %v808, 0.0
          %v841 = vmax.f32 %v809, 0.0
          %v842 = vmax.f32 %v810, 0.0
          %843 = vst [vmem:[%s228] sm:$0xff] %v811
          %844 = vst [vmem:[%s228 + $0x8] sm:$0xff] %v812
          %845 = vst [vmem:[%s228 + $0x10] sm:$0xff] %v813
          %846 = vst [vmem:[%s228 + $0x18] sm:$0xff] %v814
          %847 = vst [vmem:[%s228 + $0x20] sm:$0xff] %v815
          %848 = vst [vmem:[%s228 + $0x28] sm:$0xff] %v816
          %849 = vst [vmem:[%s228 + $0x30] sm:$0xff] %v817
          %850 = vst [vmem:[%s228 + $0x38] sm:$0xff] %v818
          %851 = vst [vmem:[%s228 + $0x40] sm:$0xff] %v819
          %852 = vst [vmem:[%s228 + $0x48] sm:$0xff] %v820
          %853 = vst [vmem:[%s228 + $0x50] sm:$0xff] %v821
          %854 = vst [vmem:[%s228 + $0x58] sm:$0xff] %v822
          %855 = vst [vmem:[%s228 + $0x60] sm:$0xff] %v823
          %856 = vst [vmem:[%s228 + $0x68] sm:$0xff] %v824
          %857 = vst [vmem:[%s228 + $0x70] sm:$0xff] %v825
          %858 = vst [vmem:[%s228 + $0x78] sm:$0xff] %v826
          %859 = vst [vmem:[%s228 + $0x80] sm:$0xff] %v827
          %860 = vst [vmem:[%s228 + $0x88] sm:$0xff] %v828
          %861 = vst [vmem:[%s228 + $0x90] sm:$0xff] %v829
          %862 = vst [vmem:[%s228 + $0x98] sm:$0xff] %v830
          %863 = vst [vmem:[%s228 + $0xa0] sm:$0xff] %v831
          %864 = vst [vmem:[%s228 + $0xa8] sm:$0xff] %v832
          %865 = vst [vmem:[%s228 + $0xb0] sm:$0xff] %v833
          %866 = vst [vmem:[%s228 + $0xb8] sm:$0xff] %v834
          %867 = vst [vmem:[%s228 + $0xc0] sm:$0xff] %v835
          %868 = vst [vmem:[%s228 + $0xc8] sm:$0xff] %v836
          %869 = vst [vmem:[%s228 + $0xd0] sm:$0xff] %v837
          %870 = vst [vmem:[%s228 + $0xd8] sm:$0xff] %v838
          %871 = vst [vmem:[%s228 + $0xe0] sm:$0xff] %v839
          %872 = vst [vmem:[%s228 + $0xe8] sm:$0xff] %v840
          %873 = vst [vmem:[%s228 + $0xf0] sm:$0xff] %v841
          %874 = vst [vmem:[%s228 + $0xf8] sm:$0xff] %v842
        $region40: #{basic_conv2d_forward.1} parent=31 // pred_fallthru
          _
        %s875 = sand.u32 %s128, 1
        %s876 = scalar_lea.sflag [#allocation4], %s875
        %s877 = sand.u32 %s128, 1
        %s878 = smul.addr %s877, 256
        %s879 = scalar_lea.vmem [#allocation3], %s878
        // Predicated region
        $region41: #{basic_conv2d_forward.1} parent=31 // pred_check
          %p880 = pneg %p138
        $region42: #{basic_conv2d_forward.1} parent=31 // pred_check_branch
          %882 = sbr.rel (%p880) target = $region44
        $region43: #{basic_conv2d_forward.1} parent=31 // pred_region
          %s883 = smul.u32 32, %s22
          %s885 = ssub.s32 4096, 4096
          %886 = vsyncadd %s876, %s885
          %s887 = sadd.s32 %s23, %s883
          %s888 = smul.addr %s887, 128
          %s889 = scalar_lea.hbm %s3, %s888
          %s890 = sshll.u32 %s879, 4
          %s891 = int_to_ptr.vmem [resolvable:$true] %s890
          %896 = dma.vmem_to_hbm [thread:$0]  %s891, 4096, %s889, %s876, 128, 128, 8
        $region44: #{basic_conv2d_forward.1} parent=31 // pred_fallthru
          _
      $region32: #{basic_conv2d_forward.1} parent=5 // pred_fallthru
        _
      %p897 = scmp.le.s32.totalorder 2, %s12
      // Predicated region
      $region45: #{basic_conv2d_forward.1} parent=5 // pred_check
        %p898 = pneg %p897
      $region46: #{basic_conv2d_forward.1} parent=5 // pred_check_branch
        %900 = sbr.rel (%p898) target = $region48
      $region47: #{basic_conv2d_forward.1} parent=5 // pred_region
        %s901 = ssub.s32 %s12, 2
        // Predicated region
        $region49: #{basic_conv2d_forward.1} parent=47 // pred_check
          %p902 = pneg %p144
        $region50: #{basic_conv2d_forward.1} parent=47 // pred_check_branch
          %904 = sbr.rel (%p902) target = $region52
        $region51: #{basic_conv2d_forward.1} parent=47 // pred_region
          %s905 = sand.u32 %s129, 1
          %s906 = scalar_lea.sflag [#allocation4], %s905
          %s907 = sand.u32 %s129, 1
          %s908 = smul.addr %s907, 256
          %s909 = scalar_lea.vmem [#allocation3], %s908
          %910 = dma.done %s906, 4096
        $region52: #{basic_conv2d_forward.1} parent=47 // pred_fallthru
          _
      $region48: #{basic_conv2d_forward.1} parent=5 // pred_fallthru
        _
    $region6: #{basic_conv2d_forward.1} parent=1 // loop_footer
      %s16 = sadd.s32 1, %s12
    $region7: #{basic_conv2d_forward.1} parent=1 // loop_footer_branch
      %11 = sbr.rel target = $region3
    $region8: #{basic_conv2d_forward.1} parent=1 // loop_exit
      _
    %911 = vsyncpa [#allocation4], 1
    %s912 = scalar_lea.sflag [#allocation4], 1
    %913 = vsyncpa %s912, 1

</llo_original>
